<compile_context>
chip_gen: v7x
topology: tpu7x:2x2x1
jax: 0.10.0
libtpu: 0.0.40
codegen_flags: <defaults>
</compile_context>

<pallas_src>
import functools

import jax
import jax.numpy as jnp
from jax.experimental import pallas as pl
from jax.experimental.pallas import tpu as pltpu

EPS = 1e-5
LANE = 128


def _two_layer_bn_kernel(x_ref, w1_ref, b1_ref, gamma_ref, beta_ref,
                         w2_ref, b2_ref, o_ref, acc_ref):
    k = pl.program_id(1)  # H (reduction) axis, innermost

    @pl.when(k == 0)
    def _init():
        acc_ref[...] = jnp.zeros_like(acc_ref)

    # fc1 for this H tile: bf16 x / w1 on the MXU, f32 accumulate, f32 bias.
    h = jnp.dot(x_ref[...], w1_ref[...],
                preferred_element_type=jnp.float32) + b1_ref[...]

    # BatchNorm1d (training mode) folded into one per-feature scale/shift.
    # Single sweep over the batch axis: mean and mean-of-squares.
    mean = jnp.mean(h, axis=0, keepdims=True)             # (1, tile_h)
    mean_sq = jnp.mean(h * h, axis=0, keepdims=True)      # (1, tile_h)
    var = mean_sq - mean * mean                           # biased batch var
    s = gamma_ref[...] * jax.lax.rsqrt(var + EPS)         # EUP rsqrt
    t = beta_ref[...] - mean * s
    a = jnp.maximum(h * s + t, 0.0)                       # BN + ReLU, f32 VPU

    # fc2 partial product for this H tile, accumulated in f32.
    acc_ref[...] += jnp.dot(a.astype(w2_ref.dtype), w2_ref[...],
                            preferred_element_type=jnp.float32)

    @pl.when(k == pl.num_programs(1) - 1)
    def _finalize():
        o_ref[...] = (acc_ref[...] + b2_ref[...]).astype(o_ref.dtype)


def _round_up(n, m):
    return ((n + m - 1) // m) * m


def _pad_to(a, shape):
    pads = [(0, t - s) for s, t in zip(a.shape, shape)]
    if all(p == (0, 0) for p in pads):
        return a
    return jnp.pad(a, pads)


@functools.partial(jax.jit, static_argnames=("tile_h", "tile_n"))
def two_layer_net(x, w1, b1, gamma, beta, w2, b2, *, tile_h=256, tile_n=256):
    """x: (B, D_in); w1: (D_in, H); b1/gamma/beta: (H,); w2: (H, D_out); b2: (D_out,)."""
    B, d_in = x.shape
    H = w1.shape[1]
    d_out = w2.shape[1]

    # Tile sizes: multiples of 128 (256 default, aligned to v6e/v7x MXU),
    # capped at the padded dim so tiny problems degenerate to a (1, 1) grid.
    tile_h = min(tile_h, _round_up(H, LANE))
    tile_n = min(tile_n, _round_up(d_out, LANE))

    d_in_p = _round_up(d_in, LANE)
    H_p = _round_up(H, tile_h)
    d_out_p = _round_up(d_out, tile_n)

    # Zero-pad to lane-dense shapes.  Zero pads are exact no-ops for the math:
    # padded hidden units see gamma=beta=0 and zero w2 rows, padded input
    # columns multiply zero w1 rows, padded output columns are sliced off.
    x_p = _pad_to(x, (B, d_in_p)).astype(jnp.bfloat16)
    w1_p = _pad_to(w1, (d_in_p, H_p)).astype(jnp.bfloat16)
    w2_p = _pad_to(w2, (H_p, d_out_p)).astype(jnp.bfloat16)
    b1_p = _pad_to(b1.reshape(1, H), (1, H_p))
    g_p = _pad_to(gamma.reshape(1, H), (1, H_p))
    bt_p = _pad_to(beta.reshape(1, H), (1, H_p))
    b2_p = _pad_to(b2.reshape(1, d_out), (1, d_out_p))

    grid = (d_out_p // tile_n, H_p // tile_h)  # (parallel, reduction)

    out_p = pl.pallas_call(
        _two_layer_bn_kernel,
        out_shape=jax.ShapeDtypeStruct((B, d_out_p), jnp.float32),
        grid_spec=pltpu.PrefetchScalarGridSpec(
            num_scalar_prefetch=0,
            grid=grid,
            in_specs=[
                pl.BlockSpec((B, d_in_p), lambda j, k: (0, 0)),       # x (VMEM-resident)
                pl.BlockSpec((d_in_p, tile_h), lambda j, k: (0, k)),  # w1 tile
                pl.BlockSpec((1, tile_h), lambda j, k: (0, k)),       # b1
                pl.BlockSpec((1, tile_h), lambda j, k: (0, k)),       # gamma
                pl.BlockSpec((1, tile_h), lambda j, k: (0, k)),       # beta
                pl.BlockSpec((tile_h, tile_n), lambda j, k: (k, j)),  # w2 tile
                pl.BlockSpec((1, tile_n), lambda j, k: (0, j)),       # b2
            ],
            out_specs=pl.BlockSpec((B, tile_n), lambda j, k: (0, j)),
            scratch_shapes=[pltpu.VMEM((B, tile_n), jnp.float32)],
        ),
        compiler_params=pltpu.CompilerParams(
            dimension_semantics=("parallel", "arbitrary"),
            vmem_limit_bytes=32 * 1024 * 1024,  # safe on v5e/v6e/v7x
        ),
    )(x_p, w1_p, b1_p, g_p, bt_p, w2_p, b2_p)

    return out_p[:, :d_out]


def init_params(key, input_size, hidden_size, output_size):
    """Deterministic init mimicking PyTorch nn.Linear defaults (U(-1/sqrt(fan_in), ...))."""
    k1, k2, k3, k4 = jax.random.split(key, 4)
    bound1 = 1.0 / (input_size ** 0.5)
    bound2 = 1.0 / (hidden_size ** 0.5)
    w1 = jax.random.uniform(k1, (input_size, hidden_size), jnp.float32,
                            minval=-bound1, maxval=bound1)
    b1 = jax.random.uniform(k2, (hidden_size,), jnp.float32,
                            minval=-bound1, maxval=bound1)
    w2 = jax.random.uniform(k3, (hidden_size, output_size), jnp.float32,
                            minval=-bound2, maxval=bound2)
    b2 = jax.random.uniform(k4, (output_size,), jnp.float32,
                            minval=-bound2, maxval=bound2)
    # BatchNorm1d default affine init: gamma=1, beta=0.
    gamma = jnp.ones((hidden_size,), jnp.float32)
    beta = jnp.zeros((hidden_size,), jnp.float32)
    return w1, b1, gamma, beta, w2, b2


def reference(x, w1, b1, gamma, beta, w2, b2):
    """Pure-JAX reference emulating the kernel's bf16 MXU inputs / f32 accumulate."""
    xb = x.astype(jnp.bfloat16).astype(jnp.float32)
    w1b = w1.astype(jnp.bfloat16).astype(jnp.float32)
    w2b = w2.astype(jnp.bfloat16).astype(jnp.float32)
    h = xb @ w1b + b1
    mean = h.mean(axis=0, keepdims=True)
    var = (h * h).mean(axis=0, keepdims=True) - mean * mean
    s = gamma * jax.lax.rsqrt(var + EPS)
    t = beta - mean * s
    a = jnp.maximum(h * s + t, 0.0)
    ab = a.astype(jnp.bfloat16).astype(jnp.float32)
    return ab @ w2b + b2


if __name__ == "__main__":
    batch, input_size, hidden_size, output_size = 8, 32, 32, 16

    key = jax.random.PRNGKey(0)
    kx, kp = jax.random.split(key)
    x = jax.random.normal(kx, (batch, input_size), jnp.float32)
    params = init_params(kp, input_size, hidden_size, output_size)

    out = two_layer_net(x, *params)
    out = jax.block_until_ready(out)

    ref = reference(x, *params)
    assert out.shape == (batch, output_size)
    assert jnp.allclose(out, ref, atol=2e-3, rtol=2e-3), "mismatch vs reference"

    print("KERNEL_OK")
</pallas_src>

<mosaic_0001>
module attributes {stable_mosaic.version = 11 : i64} {
  func.func @_two_layer_bn_kernel(%arg0: i32, %arg1: i32, %arg2: memref<8x128xbf16, #tpu.memory_space<vmem>>, %arg3: memref<128x128xbf16, #tpu.memory_space<vmem>>, %arg4: memref<1x128xf32, #tpu.memory_space<vmem>>, %arg5: memref<1x128xf32, #tpu.memory_space<vmem>>, %arg6: memref<1x128xf32, #tpu.memory_space<vmem>>, %arg7: memref<128x128xbf16, #tpu.memory_space<vmem>>, %arg8: memref<1x128xf32, #tpu.memory_space<vmem>>, %arg9: memref<8x128xf32, #tpu.memory_space<vmem>>, %arg10: memref<8x128xf32, #tpu.memory_space<vmem>>) attributes {dimension_semantics = [#tpu.dimension_semantics<parallel>, #tpu.dimension_semantics<arbitrary>], iteration_bounds = array<i64: 1, 1>, scalar_prefetch = 0 : i64, scratch_operands = 1 : i64, tpu.core_type = #tpu.core_type<tc>, window_params = [{pipeline_mode = #tpu.pipeline_mode<synchronous>, transform_indices = @transform_0, window_bounds = array<i64: 8, 128>}, {transform_indices = @transform_1, window_bounds = array<i64: 128, 128>}, {transform_indices = @transform_2, window_bounds = array<i64: 1, 128>}, {transform_indices = @transform_3, window_bounds = array<i64: 1, 128>}, {transform_indices = @transform_4, window_bounds = array<i64: 1, 128>}, {transform_indices = @transform_5, window_bounds = array<i64: 128, 128>}, {transform_indices = @transform_6, window_bounds = array<i64: 1, 128>}, {transform_indices = @transform_7, window_bounds = array<i64: 8, 128>}]} {
    %c0_i32 = arith.constant 0 : i32
    %0 = arith.cmpi eq, %arg1, %c0_i32 : i32
    %1 = arith.extui %0 : i1 to i32
    %c0_i32_0 = arith.constant 0 : i32
    %2 = arith.cmpi ne, %1, %c0_i32_0 : i32
    scf.if %2 {
      %cst_25 = arith.constant 0.000000e+00 : f32
      %43 = vector.broadcast %cst_25 : f32 to vector<8x128xf32>
      %c0_26 = arith.constant 0 : index
      %c0_27 = arith.constant 0 : index
      %44 = vector.load %arg10[%c0_26, %c0_27] : memref<8x128xf32, #tpu.memory_space<vmem>>, vector<8x128xf32>
      tpu.vector_store %arg10[%c0_26, %c0_27], %43 {strides = array<i32>} : memref<8x128xf32, #tpu.memory_space<vmem>>, vector<8x128xf32>,
    } else {
    }
    %c0 = arith.constant 0 : index
    %c0_1 = arith.constant 0 : index
    %3 = vector.load %arg2[%c0, %c0_1] : memref<8x128xbf16, #tpu.memory_space<vmem>>, vector<8x128xbf16>
    %c0_2 = arith.constant 0 : index
    %c0_3 = arith.constant 0 : index
    %4 = vector.load %arg3[%c0_2, %c0_3] : memref<128x128xbf16, #tpu.memory_space<vmem>>, vector<128x128xbf16>
    %cst = arith.constant dense<0.000000e+00> : vector<8x128xf32>
    %5 = tpu.matmul %3, %4, %cst {dimension_numbers = #tpu.dot_dimension_numbers<[1], [0], [0], [1], [0, 0, 1, 1], [], []>} : vector<8x128xbf16>, vector<128x128xbf16>, vector<8x128xf32> -> vector<8x128xf32>
    %c0_4 = arith.constant 0 : index
    %c0_5 = arith.constant 0 : index
    %6 = vector.load %arg4[%c0_4, %c0_5] : memref<1x128xf32, #tpu.memory_space<vmem>>, vector<1x128xf32>
    %7 = vector.broadcast %6 : vector<1x128xf32> to vector<8x128xf32>
    %8 = arith.addf %5, %7 : vector<8x128xf32>
    %cst_6 = arith.constant dense<0.000000e+00> : vector<128xf32>
    %9 = vector.multi_reduction <add>, %8, %cst_6 [0] : vector<8x128xf32> to vector<128xf32>
    %10 = vector.shape_cast %9 : vector<128xf32> to vector<1x128xf32>
    %cst_7 = arith.constant 8.000000e+00 : f32
    %11 = vector.broadcast %cst_7 : f32 to vector<1x128xf32>
    %12 = arith.divf %10, %11 : vector<1x128xf32>
    %13 = arith.mulf %8, %8 : vector<8x128xf32>
    %cst_8 = arith.constant dense<0.000000e+00> : vector<128xf32>
    %14 = vector.multi_reduction <add>, %13, %cst_8 [0] : vector<8x128xf32> to vector<128xf32>
    %15 = vector.shape_cast %14 : vector<128xf32> to vector<1x128xf32>
    %cst_9 = arith.constant 8.000000e+00 : f32
    %16 = vector.broadcast %cst_9 : f32 to vector<1x128xf32>
    %17 = arith.divf %15, %16 : vector<1x128xf32>
    %18 = arith.mulf %12, %12 : vector<1x128xf32>
    %19 = arith.subf %17, %18 : vector<1x128xf32>
    %c0_10 = arith.constant 0 : index
    %c0_11 = arith.constant 0 : index
    %20 = vector.load %arg5[%c0_10, %c0_11] : memref<1x128xf32, #tpu.memory_space<vmem>>, vector<1x128xf32>
    %cst_12 = arith.constant 9.99999974E-6 : f32
    %21 = vector.broadcast %cst_12 : f32 to vector<1x128xf32>
    %22 = arith.addf %19, %21 : vector<1x128xf32>
    %23 = math.rsqrt %22 : vector<1x128xf32>
    %24 = arith.mulf %20, %23 : vector<1x128xf32>
    %c0_13 = arith.constant 0 : index
    %c0_14 = arith.constant 0 : index
    %25 = vector.load %arg6[%c0_13, %c0_14] : memref<1x128xf32, #tpu.memory_space<vmem>>, vector<1x128xf32>
    %26 = arith.mulf %12, %24 : vector<1x128xf32>
    %27 = arith.subf %25, %26 : vector<1x128xf32>
    %28 = vector.broadcast %24 : vector<1x128xf32> to vector<8x128xf32>
    %29 = arith.mulf %8, %28 : vector<8x128xf32>
    %30 = vector.broadcast %27 : vector<1x128xf32> to vector<8x128xf32>
    %31 = arith.addf %29, %30 : vector<8x128xf32>
    %cst_15 = arith.constant 0.000000e+00 : f32
    %32 = vector.broadcast %cst_15 : f32 to vector<8x128xf32>
    %33 = arith.maximumf %31, %32 : vector<8x128xf32>
    %c0_16 = arith.constant 0 : index
    %c0_17 = arith.constant 0 : index
    %34 = vector.load %arg10[%c0_16, %c0_17] : memref<8x128xf32, #tpu.memory_space<vmem>>, vector<8x128xf32>
    %35 = arith.truncf %33 : vector<8x128xf32> to vector<8x128xbf16>
    %c0_18 = arith.constant 0 : index
    %c0_19 = arith.constant 0 : index
    %36 = vector.load %arg7[%c0_18, %c0_19] : memref<128x128xbf16, #tpu.memory_space<vmem>>, vector<128x128xbf16>
    %cst_20 = arith.constant dense<0.000000e+00> : vector<8x128xf32>
    %37 = tpu.matmul %35, %36, %cst_20 {dimension_numbers = #tpu.dot_dimension_numbers<[1], [0], [0], [1], [0, 0, 1, 1], [], []>} : vector<8x128xbf16>, vector<128x128xbf16>, vector<8x128xf32> -> vector<8x128xf32>
    %38 = arith.addf %34, %37 : vector<8x128xf32>
    %c0_21 = arith.constant 0 : index
    %c0_22 = arith.constant 0 : index
    %39 = vector.load %arg10[%c0_21, %c0_22] : memref<8x128xf32, #tpu.memory_space<vmem>>, vector<8x128xf32>
    tpu.vector_store %arg10[%c0_21, %c0_22], %38 {strides = array<i32>} : memref<8x128xf32, #tpu.memory_space<vmem>>, vector<8x128xf32>,
    %c0_i32_23 = arith.constant 0 : i32
    %40 = arith.cmpi eq, %arg1, %c0_i32_23 : i32
    %41 = arith.extui %40 : i1 to i32
    %c0_i32_24 = arith.constant 0 : i32
    %42 = arith.cmpi ne, %41, %c0_i32_24 : i32
    scf.if %42 {
      %c0_25 = arith.constant 0 : index
      %c0_26 = arith.constant 0 : index
      %43 = vector.load %arg10[%c0_25, %c0_26] : memref<8x128xf32, #tpu.memory_space<vmem>>, vector<8x128xf32>
      %c0_27 = arith.constant 0 : index
      %c0_28 = arith.constant 0 : index
      %44 = vector.load %arg8[%c0_27, %c0_28] : memref<1x128xf32, #tpu.memory_space<vmem>>, vector<1x128xf32>
      %45 = vector.broadcast %44 : vector<1x128xf32> to vector<8x128xf32>
      %46 = arith.addf %43, %45 : vector<8x128xf32>
      %c0_29 = arith.constant 0 : index
      %c0_30 = arith.constant 0 : index
      %47 = vector.load %arg9[%c0_29, %c0_30] : memref<8x128xf32, #tpu.memory_space<vmem>>, vector<8x128xf32>
      tpu.vector_store %arg9[%c0_29, %c0_30], %46 {strides = array<i32>} : memref<8x128xf32, #tpu.memory_space<vmem>>, vector<8x128xf32>,
    } else {
    }
    return
  }
  func.func @transform_0(%arg0: i32, %arg1: i32) -> (i32, i32) {
    %c0_i32 = arith.constant 0 : i32
    %c0_i32_0 = arith.constant 0 : i32
    %c0_i32_1 = arith.constant 0 : i32
    return %c0_i32, %c0_i32_0 : i32, i32
  }
  func.func @transform_1(%arg0: i32, %arg1: i32) -> (i32, i32) {
    %c0_i32 = arith.constant 0 : i32
    %c0_i32_0 = arith.constant 0 : i32
    return %c0_i32, %arg1 : i32, i32
  }
  func.func @transform_2(%arg0: i32, %arg1: i32) -> (i32, i32) {
    %c0_i32 = arith.constant 0 : i32
    %c0_i32_0 = arith.constant 0 : i32
    return %c0_i32, %arg1 : i32, i32
  }
  func.func @transform_3(%arg0: i32, %arg1: i32) -> (i32, i32) {
    %c0_i32 = arith.constant 0 : i32
    %c0_i32_0 = arith.constant 0 : i32
    return %c0_i32, %arg1 : i32, i32
  }
  func.func @transform_4(%arg0: i32, %arg1: i32) -> (i32, i32) {
    %c0_i32 = arith.constant 0 : i32
    %c0_i32_0 = arith.constant 0 : i32
    return %c0_i32, %arg1 : i32, i32
  }
  func.func @transform_5(%arg0: i32, %arg1: i32) -> (i32, i32) {
    %c0_i32 = arith.constant 0 : i32
    return %arg1, %arg0 : i32, i32
  }
  func.func @transform_6(%arg0: i32, %arg1: i32) -> (i32, i32) {
    %c0_i32 = arith.constant 0 : i32
    %c0_i32_0 = arith.constant 0 : i32
    return %c0_i32, %arg0 : i32, i32
  }
  func.func @transform_7(%arg0: i32, %arg1: i32) -> (i32, i32) {
    %c0_i32 = arith.constant 0 : i32
    %c0_i32_0 = arith.constant 0 : i32
    return %c0_i32, %arg0 : i32, i32
  }
}

</mosaic_0001>

<llo_original>
// kernel: two_layer_net.1
$region0: #{two_layer_net.1}
  #allocation0 [shape = 'u32[]', space=smem, size = 0x4, offset = 0x4, fixed_abs, tag = 'smem constant byte address 0x4 - core index']
  #allocation1 [shape = 'u32[144,128]{1,0:T(1,128)}', space=vmem, size = 0x12000, scoped, tag = 'internal scratch']
  #allocation2 [shape = 'f32[8,128]{1,0:T(8,128)}', space=vmem, size = 0x1000, scoped, tag = 'scratch operand']
  %s0 = inlined_call_operand.vmem [shape: bf16[8,128], index: 0, kind: input, shape index: {}]
  %s1 = inlined_call_operand.vmem [shape: bf16[128,128], index: 1, kind: input, shape index: {}]
  %s2 = inlined_call_operand.vmem [shape: f32[1,128], index: 2, kind: input, shape index: {}]
  %s3 = inlined_call_operand.vmem [shape: f32[1,128], index: 3, kind: input, shape index: {}]
  %s4 = inlined_call_operand.vmem [shape: f32[1,128], index: 4, kind: input, shape index: {}]
  %s5 = inlined_call_operand.vmem [shape: bf16[128,128], index: 5, kind: input, shape index: {}]
  %s6 = inlined_call_operand.vmem [shape: f32[1,128], index: 6, kind: input, shape index: {}]
  %s7 = inlined_call_operand.hbm [shape: f32[8,128], index: 7, kind: output, shape index: {}]
  %s8 = sld [smem:[#allocation0]]
  $region46: #{two_layer_net.1} parent=0
    _
  %s10 = ssub.s32 1, %s8
  %s11 = scalar_select 0, %s10, %s8
  $region1: #{two_layer_net.1} parent=0
    #allocation3 [shape = 'u8[4096]{0}', space=vmem, size = 0x1000, scoped, tag = 'output window, operand 0, single buffered']
    #allocation4 [shape = 's32[1]{0}', space=sflag, size = 0x4, scoped, tag = 'scoped memory for two_layer_net.1']
    %12 = vsyncpa [#allocation4], 0
    // Predicated region
    $region2: #{two_layer_net.1} parent=1 // pred_check
      _
    $region3: #{two_layer_net.1} parent=1 // pred_check_branch
      %14 = sbr.rel (0) target = $region5
    $region4: #{two_layer_net.1} parent=1 // pred_region
      _
    $region5: #{two_layer_net.1} parent=1 // pred_fallthru
      _
    // Predicated region
    $region6: #{two_layer_net.1} parent=1 // pred_check
      _
    $region7: #{two_layer_net.1} parent=1 // pred_check_branch
      %16 = sbr.rel (0) target = $region9
    $region8: #{two_layer_net.1} parent=1 // pred_region
      _
    $region9: #{two_layer_net.1} parent=1 // pred_fallthru
      _
    // Predicated region
    $region10: #{two_layer_net.1} parent=1 // pred_check
      _
    $region11: #{two_layer_net.1} parent=1 // pred_check_branch
      %18 = sbr.rel (0) target = $region13
    $region12: #{two_layer_net.1} parent=1 // pred_region
      _
    $region13: #{two_layer_net.1} parent=1 // pred_fallthru
      _
    // Predicated region
    $region14: #{two_layer_net.1} parent=1 // pred_check
      _
    $region15: #{two_layer_net.1} parent=1 // pred_check_branch
      %20 = sbr.rel (0) target = $region17
    $region16: #{two_layer_net.1} parent=1 // pred_region
      _
    $region17: #{two_layer_net.1} parent=1 // pred_fallthru
      _
    // Predicated region
    $region18: #{two_layer_net.1} parent=1 // pred_check
      _
    $region19: #{two_layer_net.1} parent=1 // pred_check_branch
      %22 = sbr.rel (0) target = $region21
    $region20: #{two_layer_net.1} parent=1 // pred_region
      _
    $region21: #{two_layer_net.1} parent=1 // pred_fallthru
      _
    // Predicated region
    $region22: #{two_layer_net.1} parent=1 // pred_check
      _
    $region23: #{two_layer_net.1} parent=1 // pred_check_branch
      %24 = sbr.rel (0) target = $region25
    $region24: #{two_layer_net.1} parent=1 // pred_region
      _
    $region25: #{two_layer_net.1} parent=1 // pred_fallthru
      _
    // Predicated region
    $region26: #{two_layer_net.1} parent=1 // pred_check
      _
    $region27: #{two_layer_net.1} parent=1 // pred_check_branch
      %26 = sbr.rel (0) target = $region29
    $region28: #{two_layer_net.1} parent=1 // pred_region
      _
    $region29: #{two_layer_net.1} parent=1 // pred_fallthru
      _
    %p28 = scmp.eq.s32.totalorder 0, 0
    // Predicated region
    $region30: #{two_layer_net.1} parent=1 // pred_check
      %p29 = pneg %p28
    $region31: #{two_layer_net.1} parent=1 // pred_check_branch
      %31 = sbr.rel (%p29) target = $region33
    $region32: #{two_layer_net.1} parent=1 // pred_region
      %32 = vst [vmem:[#allocation2] sm:$0xff] 0.0
    $region33: #{two_layer_net.1} parent=1 // pred_fallthru
      _
    %v33 = vld [vmem:[%s0] sm:$0xf]
    %v34 = vld [vmem:[%s1] sm:$0xf]
    %v35 = vld [vmem:[%s1 + $0x4] sm:$0xf]
    %v36 = vld [vmem:[%s1 + $0x8] sm:$0xf]
    %v37 = vld [vmem:[%s1 + $0xc] sm:$0xf]
    %v38 = vld [vmem:[%s1 + $0x10] sm:$0xf]
    %v39 = vld [vmem:[%s1 + $0x14] sm:$0xf]
    %v40 = vld [vmem:[%s1 + $0x18] sm:$0xf]
    %v41 = vld [vmem:[%s1 + $0x1c] sm:$0xf]
    %v42 = vld [vmem:[%s1 + $0x20] sm:$0xf]
    %v43 = vld [vmem:[%s1 + $0x24] sm:$0xf]
    %v44 = vld [vmem:[%s1 + $0x28] sm:$0xf]
    %v45 = vld [vmem:[%s1 + $0x2c] sm:$0xf]
    %v46 = vld [vmem:[%s1 + $0x30] sm:$0xf]
    %v47 = vld [vmem:[%s1 + $0x34] sm:$0xf]
    %v48 = vld [vmem:[%s1 + $0x38] sm:$0xf]
    %v49 = vld [vmem:[%s1 + $0x3c] sm:$0xf]
    %v50 = vld [vmem:[%s2] sm:$0x1]
    %v52 = vlaneseq
    %v53 = vshrl.u32 %v52, 7
    %v54 = vsub.s32 0, %v53
    %v55 = vrot.slane %v50, %v54
    %v73 = vunpack.c.l.b16 %v34
    %v74 = vunpack.c.l.b16 %v35
    %v75 = vunpack.c.l.b16 %v36
    %v76 = vunpack.c.l.b16 %v37
    %v77 = vunpack.c.l.b16 %v38
    %v78 = vunpack.c.l.b16 %v39
    %v79 = vunpack.c.l.b16 %v40
    %v80 = vunpack.c.l.b16 %v41
    %v81 = vunpack.c.l.b16 %v42
    %v82 = vunpack.c.l.b16 %v43
    %v83 = vunpack.c.l.b16 %v44
    %v84 = vunpack.c.l.b16 %v45
    %v85 = vunpack.c.l.b16 %v46
    %v86 = vunpack.c.l.b16 %v47
    %v87 = vunpack.c.l.b16 %v48
    %v88 = vunpack.c.l.b16 %v49
    %v89 = vpack.c.b16 %v74, %v73
    %v90 = vpack.c.b16 %v76, %v75
    %v91 = vpack.c.b16 %v78, %v77
    %v92 = vpack.c.b16 %v80, %v79
    %v93 = vpack.c.b16 %v82, %v81
    %v94 = vpack.c.b16 %v84, %v83
    %v95 = vpack.c.b16 %v86, %v85
    %v96 = vpack.c.b16 %v88, %v87
    %105 = vmatprep.subr.bf16.mxu0 0
    %106 = vmatpush1.bf16.msra.mxu0 %v89
    %107 = vmatprep.subr.bf16.mxu0 0
    %108 = vmatpush1.bf16.msra.mxu0 %v90
    %109 = vmatprep.subr.bf16.mxu0 0
    %110 = vmatpush1.bf16.msra.mxu0 %v91
    %111 = vmatprep.subr.bf16.mxu0 0
    %112 = vmatpush1.bf16.msra.mxu0 %v92
    %113 = vmatprep.subr.bf16.mxu0 0
    %114 = vmatpush1.bf16.msra.mxu0 %v93
    %115 = vmatprep.subr.bf16.mxu0 0
    %116 = vmatpush1.bf16.msra.mxu0 %v94
    %117 = vmatprep.subr.bf16.mxu0 0
    %118 = vmatpush1.bf16.msra.mxu0 %v95
    %119 = vmatprep.subr.bf16.mxu0 0
    %120 = vmatpush1.bf16.msra.mxu0 %v96
    %121 = vmatprep.subr.bf16.mxu0 0
    %122 = vmatpush1.bf16.msra.mxu0 0
    %123 = vmatprep.subr.bf16.mxu0 0
    %124 = vmatpush1.bf16.msra.mxu0 0
    %125 = vmatprep.subr.bf16.mxu0 0
    %126 = vmatpush1.bf16.msra.mxu0 0
    %127 = vmatprep.subr.bf16.mxu0 0
    %128 = vmatpush1.bf16.msra.mxu0 0
    %129 = vmatprep.subr.bf16.mxu0 0
    %130 = vmatpush1.bf16.msra.mxu0 0
    %131 = vmatprep.subr.bf16.mxu0 0
    %132 = vmatpush1.bf16.msra.mxu0 0
    %133 = vmatprep.subr.bf16.mxu0 0
    %134 = vmatpush1.bf16.msra.mxu0 0
    %135 = vmatprep.subr.bf16.mxu0 0
    %136 = vmatpush1.bf16.msra.mxu0 0
    %137 = vmatprep.mubr.bf16.mxu0 0
    %138 = vmatmul.mubr.bf16.gmra.mrb[0].mxu0 %v33
    %v139 = vpop.f32.mrb[0].mxu0
    %v140 = vadd.f32 %v55, %v139
    %v141 = vpop.f32.mrb[0].mxu0
    %v142 = vpop.f32.mrb[0].mxu0
    %v143 = vpop.f32.mrb[0].mxu0
    %144 = vdwg.mxu0
    %v145 = vrot.slane %v140, 4
    %v146 = vadd.f32 %v140, %v145
    %v147 = vrot.slane %v146, 2
    %v148 = vadd.f32 %v146, %v147
    %v149 = vrot.slane %v148, 1
    %v150 = vadd.f32 %v148, %v149
    %v151 = vrcp.pop 8.0
    %v152 = vmul.f32 %v150, %v151
    %v153 = vmul.f32 %v140, %v140
    %v154 = vrot.slane %v153, 4
    %v155 = vadd.f32 %v153, %v154
    %v156 = vrot.slane %v155, 2
    %v157 = vadd.f32 %v155, %v156
    %v158 = vrot.slane %v157, 1
    %v159 = vadd.f32 %v157, %v158
    %v160 = vmul.f32 %v159, %v151
    %v161 = vmul.f32 %v152, %v152
    %v162 = vsub.f32 %v160, %v161
    %v163 = vld [vmem:[%s3] sm:$0x1]
    %v164 = vadd.f32 %v162, 1e-05
    %v165 = vrsqrt.pop %v164
    %v166 = vmul.f32 %v163, %v165
    %v167 = vld [vmem:[%s4] sm:$0x1]
    %v168 = vmul.f32 %v152, %v166
    %v169 = vsub.f32 %v167, %v168
    %v171 = vlaneseq
    %v172 = vshrl.u32 %v171, 7
    %v173 = vsub.s32 0, %v172
    %v174 = vrot.slane %v166, %v173
    %v176 = vmul.f32 %v140, %v174
    %v178 = vlaneseq
    %v179 = vshrl.u32 %v178, 7
    %v180 = vsub.s32 0, %v179
    %v181 = vrot.slane %v169, %v180
    %v183 = vadd.f32 %v176, %v181
    %v184 = vmax.f32 %v183, 0.0
    %v185 = vld [vmem:[#allocation2] sm:$0xff]
    %v186 = vpack.c.bf16 %v184, %v184
    %v187 = vld [vmem:[%s5] sm:$0xf]
    %v188 = vld [vmem:[%s5 + $0x4] sm:$0xf]
    %v189 = vld [vmem:[%s5 + $0x8] sm:$0xf]
    %v190 = vld [vmem:[%s5 + $0xc] sm:$0xf]
    %v191 = vld [vmem:[%s5 + $0x10] sm:$0xf]
    %v192 = vld [vmem:[%s5 + $0x14] sm:$0xf]
    %v193 = vld [vmem:[%s5 + $0x18] sm:$0xf]
    %v194 = vld [vmem:[%s5 + $0x1c] sm:$0xf]
    %v195 = vld [vmem:[%s5 + $0x20] sm:$0xf]
    %v196 = vld [vmem:[%s5 + $0x24] sm:$0xf]
    %v197 = vld [vmem:[%s5 + $0x28] sm:$0xf]
    %v198 = vld [vmem:[%s5 + $0x2c] sm:$0xf]
    %v199 = vld [vmem:[%s5 + $0x30] sm:$0xf]
    %v200 = vld [vmem:[%s5 + $0x34] sm:$0xf]
    %v201 = vld [vmem:[%s5 + $0x38] sm:$0xf]
    %v202 = vld [vmem:[%s5 + $0x3c] sm:$0xf]
    %v219 = vunpack.c.l.b16 %v187
    %v220 = vunpack.c.l.b16 %v188
    %v221 = vunpack.c.l.b16 %v189
    %v222 = vunpack.c.l.b16 %v190
    %v223 = vunpack.c.l.b16 %v191
    %v224 = vunpack.c.l.b16 %v192
    %v225 = vunpack.c.l.b16 %v193
    %v226 = vunpack.c.l.b16 %v194
    %v227 = vunpack.c.l.b16 %v195
    %v228 = vunpack.c.l.b16 %v196
    %v229 = vunpack.c.l.b16 %v197
    %v230 = vunpack.c.l.b16 %v198
    %v231 = vunpack.c.l.b16 %v199
    %v232 = vunpack.c.l.b16 %v200
    %v233 = vunpack.c.l.b16 %v201
    %v234 = vunpack.c.l.b16 %v202
    %v235 = vpack.c.b16 %v220, %v219
    %v236 = vpack.c.b16 %v222, %v221
    %v237 = vpack.c.b16 %v224, %v223
    %v238 = vpack.c.b16 %v226, %v225
    %v239 = vpack.c.b16 %v228, %v227
    %v240 = vpack.c.b16 %v230, %v229
    %v241 = vpack.c.b16 %v232, %v231
    %v242 = vpack.c.b16 %v234, %v233
    %251 = vmatprep.subr.bf16.mxu0 0
    %252 = vmatpush1.bf16.msra.mxu0 %v235
    %253 = vmatprep.subr.bf16.mxu0 0
    %254 = vmatpush1.bf16.msra.mxu0 %v236
    %255 = vmatprep.subr.bf16.mxu0 0
    %256 = vmatpush1.bf16.msra.mxu0 %v237
    %257 = vmatprep.subr.bf16.mxu0 0
    %258 = vmatpush1.bf16.msra.mxu0 %v238
    %259 = vmatprep.subr.bf16.mxu0 0
    %260 = vmatpush1.bf16.msra.mxu0 %v239
    %261 = vmatprep.subr.bf16.mxu0 0
    %262 = vmatpush1.bf16.msra.mxu0 %v240
    %263 = vmatprep.subr.bf16.mxu0 0
    %264 = vmatpush1.bf16.msra.mxu0 %v241
    %265 = vmatprep.subr.bf16.mxu0 0
    %266 = vmatpush1.bf16.msra.mxu0 %v242
    %267 = vmatprep.subr.bf16.mxu0 0
    %268 = vmatpush1.bf16.msra.mxu0 0
    %269 = vmatprep.subr.bf16.mxu0 0
    %270 = vmatpush1.bf16.msra.mxu0 0
    %271 = vmatprep.subr.bf16.mxu0 0
    %272 = vmatpush1.bf16.msra.mxu0 0
    %273 = vmatprep.subr.bf16.mxu0 0
    %274 = vmatpush1.bf16.msra.mxu0 0
    %275 = vmatprep.subr.bf16.mxu0 0
    %276 = vmatpush1.bf16.msra.mxu0 0
    %277 = vmatprep.subr.bf16.mxu0 0
    %278 = vmatpush1.bf16.msra.mxu0 0
    %279 = vmatprep.subr.bf16.mxu0 0
    %280 = vmatpush1.bf16.msra.mxu0 0
    %281 = vmatprep.subr.bf16.mxu0 0
    %282 = vmatpush1.bf16.msra.mxu0 0
    %283 = vmatprep.mubr.bf16.mxu0 0
    %284 = vmatmul.mubr.bf16.gmra.mrb[0].mxu0 %v186
    %v285 = vpop.f32.mrb[0].mxu0
    %v286 = vadd.f32 0.0, %v285
    %v287 = vpop.f32.mrb[0].mxu0
    %v288 = vpop.f32.mrb[0].mxu0
    %v289 = vpop.f32.mrb[0].mxu0
    %290 = vdwg.mxu0
    %v291 = vadd.f32 %v185, %v286
    %292 = vst [vmem:[#allocation2] sm:$0xff] %v291
    // Predicated region
    $region34: #{two_layer_net.1} parent=1 // pred_check
      %p293 = pneg %p28
    $region35: #{two_layer_net.1} parent=1 // pred_check_branch
      %295 = sbr.rel (%p293) target = $region37
    $region36: #{two_layer_net.1} parent=1 // pred_region
      %v296 = vld [vmem:[#allocation2] sm:$0xff]
      %v297 = vld [vmem:[%s6] sm:$0x1]
      %v299 = vlaneseq
      %v300 = vshrl.u32 %v299, 7
      %v301 = vsub.s32 0, %v300
      %v302 = vrot.slane %v297, %v301
      %v304 = vadd.f32 %v296, %v302
      %305 = vst [vmem:[#allocation3] sm:$0xff] %v304
    $region37: #{two_layer_net.1} parent=1 // pred_fallthru
      _
    // Predicated region
    $region38: #{two_layer_net.1} parent=1 // pred_check
      _
    $region39: #{two_layer_net.1} parent=1 // pred_check_branch
      %307 = sbr.rel (0) target = $region41
    $region40: #{two_layer_net.1} parent=1 // pred_region
      %s309 = ssub.s32 128, 128
      %310 = vsyncadd [#allocation4], %s309
      %s312 = sshll.u32 [#allocation3], 4
      %s313 = int_to_ptr.vmem [resolvable:$true] %s312
      %315 = dma.vmem_to_hbm [thread:$0]  %s313, 128, %s7, [#allocation4]
    $region41: #{two_layer_net.1} parent=1 // pred_fallthru
      _
    // Predicated region
    $region42: #{two_layer_net.1} parent=1 // pred_check
      _
    $region43: #{two_layer_net.1} parent=1 // pred_check_branch
      %317 = sbr.rel (0) target = $region45
    $region44: #{two_layer_net.1} parent=1 // pred_region
      %318 = dma.done [#allocation4], 128
    $region45: #{two_layer_net.1} parent=1 // pred_fallthru
      _
    %319 = vsyncpa [#allocation4], 1

</llo_original>
